<compile_context>
chip_gen: v7x
topology: tpu7x:2x2x1
jax: 0.10.0
libtpu: 0.0.40
codegen_flags: <defaults>
</compile_context>

<pallas_src>
import jax
import jax.numpy as jnp
from jax.experimental import pallas as pl
from jax.experimental.pallas import tpu as pltpu

_LANE = 128
_SUBLANE = 8
_TARGET_STEP_BYTES = 4 << 20      # aim for ~4 MiB of HBM traffic per grid step


def _round_up(x, m):
    return ((x + m - 1) // m) * m


def _supports_buffered_blockspec():
    """One-time feature detection for BlockSpec(pipeline_mode=pl.Buffered(k))."""
    try:
        pl.BlockSpec((_SUBLANE, _LANE), lambda i: (0, 0),
                     pipeline_mode=pl.Buffered(1))
        return True
    except Exception:
        return False


_HAS_BUFFERED = _supports_buffered_blockspec()


def _vmem_capacity_bytes():
    """Per-core VMEM capacity; fall back to the v7x-safe 64 MiB."""
    try:
        return int(pltpu.get_tpu_info().vmem_capacity_bytes)
    except Exception:
        return 64 << 20


def _choose_batch_tile(B, D, Lp, tile_budget_bytes):
    """Pick TB by HBM roofline, subject to the double-buffered VMEM budget."""
    per_row_hbm = (D + 2 * Lp) * 4                # x read + attn read + out write
    tb = _round_up(max(1, _TARGET_STEP_BYTES // per_row_hbm), _SUBLANE)
    per_row_vmem = 2 * (D + 2 * Lp) * 4           # double-buffered tiles in VMEM
    tb_cap = max(_SUBLANE,
                 (tile_budget_bytes // per_row_vmem) // _SUBLANE * _SUBLANE)
    tb = min(tb, tb_cap, 2048)
    if tb >= B:
        # Keep at least 2 grid steps when the (8,*) rule allows, so the
        # x/attn/out DMAs overlap compute; otherwise use the full extent.
        if B >= 2 * _SUBLANE:
            tb = min(tb, _round_up(pl.cdiv(B, 2), _SUBLANE))
            if tb >= B:
                tb = B
        else:
            tb = B
    return tb


def _copy_mech_kernel(x_ref, w_ref, b_ref, attn_ref, out_ref):
    # logits = x @ W + b  (MXU, f32 accumulate, full-precision passes).
    logits = jnp.dot(x_ref[...], w_ref[...],
                     preferred_element_type=jnp.float32,
                     precision=jax.lax.Precision.HIGHEST) + b_ref[...]
    # Numerically-stable softmax over the last (max_length) dim.
    m = jnp.max(logits, axis=-1, keepdims=True)
    e = jnp.exp(logits - m)
    denom = jnp.sum(e, axis=-1, keepdims=True)
    # Approx reciprocal on the EUP (separate VLIW slot) + one Newton step to
    # recover full f32 accuracy.
    r = pl.reciprocal(denom, approx=True)
    r = r * (2.0 - denom * r)
    probs = e * r
    # copy_weights = attention_weights * copy_probs
    out_ref[...] = (attn_ref[...] * probs).astype(out_ref.dtype)


def copy_mechanism(x, weight_t, bias, attention_weights):
    """x: (B, D), weight_t: (D, L), bias: (L,) or (1, L), attention_weights: (B, L)."""
    x = jnp.asarray(x, jnp.float32)
    weight_t = jnp.asarray(weight_t, jnp.float32)
    attention_weights = jnp.asarray(attention_weights, jnp.float32)
    bias = jnp.asarray(bias, jnp.float32).reshape(1, -1)

    B, D = x.shape
    L = weight_t.shape[1]

    # ---- lane-dense output: pad L up to a multiple of 128 ------------------
    # Padded weight columns are 0 and padded bias lanes are -1e30, so padded
    # logits exp() to 0 and the softmax denominator over the real L lanes is
    # unchanged; padded attention lanes are 0.  Padded output columns are
    # sliced off at the end.
    Lp = _round_up(L, _LANE)
    if Lp != L:
        pad = Lp - L
        weight_t = jnp.pad(weight_t, ((0, 0), (0, pad)))
        bias = jnp.pad(bias, ((0, 0), (0, pad)), constant_values=-1e30)
        attention_weights = jnp.pad(attention_weights, ((0, 0), (0, pad)))

    # ---- VMEM budgeting -----------------------------------------------------
    vmem_cap = _vmem_capacity_bytes()
    budget = int(vmem_cap * 0.75)             # leave headroom for compiler scratch
    resident_bytes = (D * Lp + _SUBLANE * Lp) * 4      # weight + (sublane-padded) bias
    if not _HAS_BUFFERED:
        resident_bytes *= 2                   # default pipelining double-buffers
    # TODO(synk): if resident_bytes approaches the budget (large input_dim *
    # max_length, esp. on v7x's 64 MiB VMEM), add a K(=D) reduction grid axis
    # (arbitrary, last) with a VMEM f32 accumulator, or tile L with an online
    # softmax, and/or store the weight in bf16.
    tile_budget = max(budget - resident_bytes, 4 << 20)

    TB = _choose_batch_tile(B, D, Lp, tile_budget)
    grid = (pl.cdiv(B, TB),)

    footprint = 2 * TB * (D + 2 * Lp) * 4 + resident_bytes
    vmem_limit = int(footprint * 1.25) + (4 << 20)
    vmem_limit = max(16 << 20, min(vmem_limit, budget))

    # ---- specs ---------------------------------------------------------------
    resident_kwargs = ({"pipeline_mode": pl.Buffered(1)} if _HAS_BUFFERED else {})
    in_specs = [
        pl.BlockSpec((TB, D), lambda i: (i, 0)),                    # x: batch-tiled
        pl.BlockSpec((D, Lp), lambda i: (0, 0), **resident_kwargs),  # weight: resident
        pl.BlockSpec((1, Lp), lambda i: (0, 0), **resident_kwargs),  # bias: resident
        pl.BlockSpec((TB, Lp), lambda i: (i, 0)),                   # attn: batch-tiled
    ]
    out_specs = pl.BlockSpec((TB, Lp), lambda i: (i, 0))

    # TODO(synk): on v7x, verify with a profile that the batch axis really
    # shards across both TensorCores under "parallel"; if one TC is idle,
    # switch this axis to pltpu.CORE_PARALLEL.
    out = pl.pallas_call(
        _copy_mech_kernel,
        out_shape=jax.ShapeDtypeStruct((B, Lp), jnp.float32),
        grid_spec=pltpu.PrefetchScalarGridSpec(
            num_scalar_prefetch=0,
            grid=grid,
            in_specs=in_specs,
            out_specs=out_specs,
        ),
        compiler_params=pltpu.CompilerParams(
            dimension_semantics=("parallel",),
            vmem_limit_bytes=vmem_limit,
        ),
    )(x, weight_t, bias, attention_weights)

    return out[:, :L] if Lp != L else out


def reference(x, weight_t, bias, attention_weights):
    logits = x @ weight_t + bias.reshape(1, -1)
    probs = jax.nn.softmax(logits, axis=-1)
    return attention_weights * probs


if __name__ == "__main__":
    batch = 8
    input_dim = 32
    max_length = 128

    key = jax.random.PRNGKey(0)
    kx, ka, kw, kb = jax.random.split(key, 4)

    x = jax.random.normal(kx, (batch, input_dim), dtype=jnp.float32)
    attention_weights = jax.nn.softmax(
        jax.random.normal(ka, (batch, max_length), dtype=jnp.float32), axis=-1)

    # Deterministic parameter init mimicking nn.Linear(input_dim, max_length):
    # weight (max_length, input_dim) ~ U(-1/sqrt(in), 1/sqrt(in)); stored transposed.
    bound = 1.0 / (input_dim ** 0.5)
    w_pt = jax.random.uniform(kw, (max_length, input_dim),
                              minval=-bound, maxval=bound, dtype=jnp.float32)
    weight_t = w_pt.T                                   # (input_dim, max_length)
    bias = jax.random.uniform(kb, (1, max_length),
                              minval=-bound, maxval=bound, dtype=jnp.float32)

    ref = reference(x, weight_t, bias, attention_weights)

    out = copy_mechanism(x, weight_t, bias, attention_weights)
    out = jax.block_until_ready(out)

    assert out.shape == (batch, max_length)
    assert jnp.allclose(out, ref, atol=1e-5, rtol=1e-5)

    print("KERNEL_OK")
</pallas_src>

<mosaic_0001>
module attributes {stable_mosaic.version = 11 : i64} {
  func.func @_copy_mech_kernel(%arg0: i32, %arg1: memref<8x32xf32, #tpu.memory_space<vmem>>, %arg2: memref<32x128xf32, #tpu.memory_space<vmem>>, %arg3: memref<1x128xf32, #tpu.memory_space<vmem>>, %arg4: memref<8x128xf32, #tpu.memory_space<vmem>>, %arg5: memref<8x128xf32, #tpu.memory_space<vmem>>) attributes {dimension_semantics = [#tpu.dimension_semantics<parallel>], iteration_bounds = array<i64: 1>, scalar_prefetch = 0 : i64, scratch_operands = 0 : i64, tpu.core_type = #tpu.core_type<tc>, window_params = [{transform_indices = @transform_0, window_bounds = array<i64: 8, 32>}, {pipeline_mode = #tpu.pipeline_mode<synchronous>, transform_indices = @transform_1, window_bounds = array<i64: 32, 128>}, {pipeline_mode = #tpu.pipeline_mode<synchronous>, transform_indices = @transform_2, window_bounds = array<i64: 1, 128>}, {transform_indices = @transform_3, window_bounds = array<i64: 8, 128>}, {transform_indices = @transform_4, window_bounds = array<i64: 8, 128>}]} {
    %c0 = arith.constant 0 : index
    %c0_0 = arith.constant 0 : index
    %0 = vector.load %arg1[%c0, %c0_0] : memref<8x32xf32, #tpu.memory_space<vmem>>, vector<8x32xf32>
    %c0_1 = arith.constant 0 : index
    %c0_2 = arith.constant 0 : index
    %1 = vector.load %arg2[%c0_1, %c0_2] : memref<32x128xf32, #tpu.memory_space<vmem>>, vector<32x128xf32>
    %cst = arith.constant dense<0.000000e+00> : vector<8x128xf32>
    %2 = tpu.matmul %0, %1, %cst {dimension_numbers = #tpu.dot_dimension_numbers<[1], [0], [0], [1], [0, 0, 1, 1], [], []>, precision = #tpu.contract_precision<fp32>} : vector<8x32xf32>, vector<32x128xf32>, vector<8x128xf32> -> vector<8x128xf32>
    %c0_3 = arith.constant 0 : index
    %c0_4 = arith.constant 0 : index
    %3 = vector.load %arg3[%c0_3, %c0_4] : memref<1x128xf32, #tpu.memory_space<vmem>>, vector<1x128xf32>
    %4 = vector.broadcast %3 : vector<1x128xf32> to vector<8x128xf32>
    %5 = arith.addf %2, %4 : vector<8x128xf32>
    %cst_5 = arith.constant dense<0xFF800000> : vector<8xf32>
    %6 = vector.multi_reduction <maximumf>, %5, %cst_5 [1] : vector<8x128xf32> to vector<8xf32>
    %7 = vector.shape_cast %6 : vector<8xf32> to vector<8x1xf32>
    %8 = vector.broadcast %7 : vector<8x1xf32> to vector<8x128xf32>
    %9 = arith.subf %5, %8 : vector<8x128xf32>
    %10 = math.exp %9 : vector<8x128xf32>
    %cst_6 = arith.constant dense<0.000000e+00> : vector<8xf32>
    %11 = vector.multi_reduction <add>, %10, %cst_6 [1] : vector<8x128xf32> to vector<8xf32>
    %12 = vector.shape_cast %11 : vector<8xf32> to vector<8x1xf32>
    %13 = tpu.reciprocal %12 {approx = true} : vector<8x1xf32> -> vector<8x1xf32>
    %14 = arith.mulf %12, %13 : vector<8x1xf32>
    %cst_7 = arith.constant 2.000000e+00 : f32
    %15 = vector.broadcast %cst_7 : f32 to vector<8x1xf32>
    %16 = arith.subf %15, %14 : vector<8x1xf32>
    %17 = arith.mulf %13, %16 : vector<8x1xf32>
    %18 = vector.broadcast %17 : vector<8x1xf32> to vector<8x128xf32>
    %19 = arith.mulf %10, %18 : vector<8x128xf32>
    %c0_8 = arith.constant 0 : index
    %c0_9 = arith.constant 0 : index
    %20 = vector.load %arg4[%c0_8, %c0_9] : memref<8x128xf32, #tpu.memory_space<vmem>>, vector<8x128xf32>
    %21 = arith.mulf %20, %19 : vector<8x128xf32>
    %c0_10 = arith.constant 0 : index
    %c0_11 = arith.constant 0 : index
    %22 = vector.load %arg5[%c0_10, %c0_11] : memref<8x128xf32, #tpu.memory_space<vmem>>, vector<8x128xf32>
    tpu.vector_store %arg5[%c0_10, %c0_11], %21 {strides = array<i32>} : memref<8x128xf32, #tpu.memory_space<vmem>>, vector<8x128xf32>,
    return
  }
  func.func @transform_0(%arg0: i32) -> (i32, i32) {
    %c0_i32 = arith.constant 0 : i32
    %c0_i32_0 = arith.constant 0 : i32
    return %arg0, %c0_i32 : i32, i32
  }
  func.func @transform_1(%arg0: i32) -> (i32, i32) {
    %c0_i32 = arith.constant 0 : i32
    %c0_i32_0 = arith.constant 0 : i32
    %c0_i32_1 = arith.constant 0 : i32
    return %c0_i32, %c0_i32_0 : i32, i32
  }
  func.func @transform_2(%arg0: i32) -> (i32, i32) {
    %c0_i32 = arith.constant 0 : i32
    %c0_i32_0 = arith.constant 0 : i32
    %c0_i32_1 = arith.constant 0 : i32
    return %c0_i32, %c0_i32_0 : i32, i32
  }
  func.func @transform_3(%arg0: i32) -> (i32, i32) {
    %c0_i32 = arith.constant 0 : i32
    %c0_i32_0 = arith.constant 0 : i32
    return %arg0, %c0_i32 : i32, i32
  }
  func.func @transform_4(%arg0: i32) -> (i32, i32) {
    %c0_i32 = arith.constant 0 : i32
    %c0_i32_0 = arith.constant 0 : i32
    return %arg0, %c0_i32 : i32, i32
  }
}

</mosaic_0001>

<llo_original>
// kernel: tpu_custom_call.1
$region0: #{tpu_custom_call.1}
  #allocation0 [shape = 'u32[]', space=smem, size = 0x4, offset = 0x4, fixed_abs, tag = 'smem constant byte address 0x4 - core index']
  #allocation1 [shape = 'u32[144,128]{1,0:T(1,128)}', space=vmem, size = 0x12000, scoped, tag = 'internal scratch']
  %s0 = inlined_call_operand.hbm [shape: f32[8,32], index: 0, kind: input, shape index: {}]
  %s1 = inlined_call_operand.hbm [shape: f32[32,128], index: 1, kind: input, shape index: {}]
  %s2 = inlined_call_operand.vmem [shape: f32[1,128], index: 2, kind: input, shape index: {}]
  %s3 = inlined_call_operand.vmem [shape: f32[8,128], index: 3, kind: input, shape index: {}]
  %s4 = inlined_call_operand.hbm [shape: f32[8,128], index: 4, kind: output, shape index: {}]
  %s5 = sld [smem:[#allocation0]]
  $region34: #{tpu_custom_call.1} parent=0
    _
  %s7 = ssub.s32 1, %s5
  %s8 = scalar_select 0, %s7, %s5
  $region1: #{tpu_custom_call.1} parent=0
    #allocation2 [shape = 'u8[4096]{0}', space=vmem, size = 0x1000, scoped, tag = 'input window, operand 0, single buffered']
    #allocation3 [shape = 's32[1]{0}', space=sflag, size = 0x4, scoped, tag = 'scoped memory for tpu_custom_call.1']
    #allocation4 [shape = 's32[1]{0}', space=sflag, size = 0x4, scoped, tag = 'scoped memory for tpu_custom_call.1']
    #allocation5 [shape = 'u8[16384]{0}', space=vmem, size = 0x4000, scoped, tag = 'input window, operand 1, single buffered']
    #allocation6 [shape = 's32[1]{0}', space=sflag, size = 0x4, scoped, tag = 'scoped memory for tpu_custom_call.1']
    #allocation7 [shape = 'u8[4096]{0}', space=vmem, size = 0x1000, scoped, tag = 'output window, operand 0, single buffered']
    %9 = vsyncpa [#allocation3], 0
    %10 = vsyncpa [#allocation6], 0
    %11 = vsyncpa [#allocation4], 0
    // Predicated region
    $region2: #{tpu_custom_call.1} parent=1 // pred_check
      _
    $region3: #{tpu_custom_call.1} parent=1 // pred_check_branch
      %13 = sbr.rel (0) target = $region5
    $region4: #{tpu_custom_call.1} parent=1 // pred_region
      %s15 = ssub.s32 128, 128
      %16 = vsyncadd [#allocation3], %s15
      %s18 = sshll.u32 [#allocation2], 4
      %s19 = int_to_ptr.vmem [resolvable:$true] %s18
      %21 = dma.hbm_to_vmem [thread:$0]  %s0, 128, %s19, [#allocation3]
    $region5: #{tpu_custom_call.1} parent=1 // pred_fallthru
      _
    // Predicated region
    $region6: #{tpu_custom_call.1} parent=1 // pred_check
      _
    $region7: #{tpu_custom_call.1} parent=1 // pred_check_branch
      %23 = sbr.rel (0) target = $region9
    $region8: #{tpu_custom_call.1} parent=1 // pred_region
      %s25 = ssub.s32 512, 512
      %26 = vsyncadd [#allocation6], %s25
      %s27 = sshll.u32 [#allocation5], 4
      %s28 = int_to_ptr.vmem [resolvable:$true] %s27
      %33 = dma.hbm_to_vmem [thread:$0]  %s1, 512, %s28, [#allocation6], 128, 128, 8
    $region9: #{tpu_custom_call.1} parent=1 // pred_fallthru
      _
    // Predicated region
    $region10: #{tpu_custom_call.1} parent=1 // pred_check
      _
    $region11: #{tpu_custom_call.1} parent=1 // pred_check_branch
      %35 = sbr.rel (0) target = $region13
    $region12: #{tpu_custom_call.1} parent=1 // pred_region
      _
    $region13: #{tpu_custom_call.1} parent=1 // pred_fallthru
      _
    // Predicated region
    $region14: #{tpu_custom_call.1} parent=1 // pred_check
      _
    $region15: #{tpu_custom_call.1} parent=1 // pred_check_branch
      %37 = sbr.rel (0) target = $region17
    $region16: #{tpu_custom_call.1} parent=1 // pred_region
      _
    $region17: #{tpu_custom_call.1} parent=1 // pred_fallthru
      _
    // Predicated region
    $region18: #{tpu_custom_call.1} parent=1 // pred_check
      _
    $region19: #{tpu_custom_call.1} parent=1 // pred_check_branch
      %39 = sbr.rel (0) target = $region21
    $region20: #{tpu_custom_call.1} parent=1 // pred_region
      %40 = dma.done [#allocation3], 128
    $region21: #{tpu_custom_call.1} parent=1 // pred_fallthru
      _
    // Predicated region
    $region22: #{tpu_custom_call.1} parent=1 // pred_check
      _
    $region23: #{tpu_custom_call.1} parent=1 // pred_check_branch
      %42 = sbr.rel (0) target = $region25
    $region24: #{tpu_custom_call.1} parent=1 // pred_region
      %43 = dma.done [#allocation6], 512
    $region25: #{tpu_custom_call.1} parent=1 // pred_fallthru
      _
    %v44 = vld [vmem:[#allocation2] sm:$0xff]
    %v45 = vld [vmem:[#allocation5] sm:$0xff]
    %v46 = vld [vmem:[#allocation5 + $0x8] sm:$0xff]
    %v47 = vld [vmem:[#allocation5 + $0x10] sm:$0xff]
    %v48 = vld [vmem:[#allocation5 + $0x18] sm:$0xff]
    %v49 = vld [vmem:[%s2] sm:$0x1]
    %v51 = vlaneseq
    %v52 = vshrl.u32 %v51, 7
    %v53 = vsub.s32 0, %v52
    %v54 = vrot.slane %v49, %v53
    %vm56 = vcmask 261120
    %v58 = vsel %vm56, %v44, 0
    %60 = vmatprep.subr.mxu0 0.0
    %v61 = vand.u32 %v45, 4294901760
    %62 = vmatpush1.msra.mxu0 %v61
    %63 = vmatprep.subr.mxu0 0.0
    %v64 = vand.u32 %v46, 4294901760
    %65 = vmatpush1.msra.mxu0 %v64
    %66 = vmatprep.subr.mxu0 0.0
    %v67 = vand.u32 %v47, 4294901760
    %68 = vmatpush1.msra.mxu0 %v67
    %69 = vmatprep.subr.mxu0 0.0
    %v70 = vand.u32 %v48, 4294901760
    %71 = vmatpush1.msra.mxu0 %v70
    %72 = vmatprep.subr.mxu0 0.0
    %73 = vmatpush1.msra.mxu0 0.0
    %74 = vmatprep.subr.mxu0 0.0
    %75 = vmatpush1.msra.mxu0 0.0
    %76 = vmatprep.subr.mxu0 0.0
    %77 = vmatpush1.msra.mxu0 0.0
    %78 = vmatprep.subr.mxu0 0.0
    %79 = vmatpush1.msra.mxu0 0.0
    %80 = vmatprep.subr.mxu0 0.0
    %81 = vmatpush1.msra.mxu0 0.0
    %82 = vmatprep.subr.mxu0 0.0
    %83 = vmatpush1.msra.mxu0 0.0
    %84 = vmatprep.subr.mxu0 0.0
    %85 = vmatpush1.msra.mxu0 0.0
    %86 = vmatprep.subr.mxu0 0.0
    %87 = vmatpush1.msra.mxu0 0.0
    %88 = vmatprep.subr.mxu0 0.0
    %89 = vmatpush1.msra.mxu0 0.0
    %90 = vmatprep.subr.mxu0 0.0
    %91 = vmatpush1.msra.mxu0 0.0
    %92 = vmatprep.subr.mxu0 0.0
    %93 = vmatpush1.msra.mxu0 0.0
    %94 = vmatprep.subr.mxu0 0.0
    %95 = vmatpush1.msra.mxu0 0.0
    %96 = vmatprep.subr.mxu0 0.0
    %97 = vmatpush1.msra.mxu0 0.0
    %98 = vmatprep.subr.mxu0 0.0
    %99 = vmatpush1.msra.mxu0 0.0
    %100 = vmatprep.subr.mxu0 0.0
    %101 = vmatpush1.msra.mxu0 0.0
    %102 = vmatprep.subr.mxu0 0.0
    %103 = vmatpush1.msra.mxu0 0.0
    %104 = vmatprep.subr.mxu0 0.0
    %105 = vmatpush1.msra.mxu0 0.0
    %106 = vmatprep.subr.mxu0 0.0
    %107 = vmatpush1.msra.mxu0 0.0
    %108 = vmatprep.subr.mxu0 0.0
    %109 = vmatpush1.msra.mxu0 0.0
    %110 = vmatprep.subr.mxu0 0.0
    %111 = vmatpush1.msra.mxu0 0.0
    %112 = vmatprep.subr.mxu0 0.0
    %113 = vmatpush1.msra.mxu0 0.0
    %114 = vmatprep.subr.mxu0 0.0
    %115 = vmatpush1.msra.mxu0 0.0
    %116 = vmatprep.subr.mxu0 0.0
    %117 = vmatpush1.msra.mxu0 0.0
    %118 = vmatprep.subr.mxu0 0.0
    %119 = vmatpush1.msra.mxu0 0.0
    %120 = vmatprep.subr.mxu0 0.0
    %121 = vmatpush1.msra.mxu0 0.0
    %122 = vmatprep.subr.mxu0 0.0
    %123 = vmatpush1.msra.mxu0 0.0
    %124 = vmatprep.subr.mxu0 0.0
    %125 = vmatpush1.msra.mxu0 0.0
    %126 = vmatprep.subr.mxu0 0.0
    %127 = vmatpush1.msra.mxu0 0.0
    %128 = vmatprep.mubr.f32.mxu0 0.0
    %v129 = vand.u32 %v58, 4294901760
    %v130 = vsub.f32 %v58, %v129
    %v131 = vand.u32 %v130, 4294901760
    %v132 = vsub.f32 %v130, %v131
    %v133 = vand.u32 %v132, 4294901760
    %134 = vmatmul.mubr.f32.gmra.mrb[0].mxu0 %v133
    %v135 = vpop.f32.mrb[0].mxu0
    %v136 = vadd.f32 %v54, %v135
    %v137 = vpop.f32.mrb[0].mxu0
    %138 = vdwg.mxu0
    %139 = vmatprep.subr.mxu0 0.0
    %v140 = vand.u32 %v45, 4294901760
    %v141 = vsub.f32 %v45, %v140
    %v142 = vand.u32 %v141, 4294901760
    %v143 = vsub.f32 %v141, %v142
    %v144 = vand.u32 %v143, 4294901760
    %145 = vmatpush1.msra.mxu0 %v144
    %146 = vmatprep.subr.mxu0 0.0
    %v147 = vand.u32 %v46, 4294901760
    %v148 = vsub.f32 %v46, %v147
    %v149 = vand.u32 %v148, 4294901760
    %v150 = vsub.f32 %v148, %v149
    %v151 = vand.u32 %v150, 4294901760
    %152 = vmatpush1.msra.mxu0 %v151
    %153 = vmatprep.subr.mxu0 0.0
    %v154 = vand.u32 %v47, 4294901760
    %v155 = vsub.f32 %v47, %v154
    %v156 = vand.u32 %v155, 4294901760
    %v157 = vsub.f32 %v155, %v156
    %v158 = vand.u32 %v157, 4294901760
    %159 = vmatpush1.msra.mxu0 %v158
    %160 = vmatprep.subr.mxu0 0.0
    %v161 = vand.u32 %v48, 4294901760
    %v162 = vsub.f32 %v48, %v161
    %v163 = vand.u32 %v162, 4294901760
    %v164 = vsub.f32 %v162, %v163
    %v165 = vand.u32 %v164, 4294901760
    %166 = vmatpush1.msra.mxu0 %v165
    %167 = vmatprep.subr.mxu0 0.0
    %168 = vmatpush1.msra.mxu0 0.0
    %169 = vmatprep.subr.mxu0 0.0
    %170 = vmatpush1.msra.mxu0 0.0
    %171 = vmatprep.subr.mxu0 0.0
    %172 = vmatpush1.msra.mxu0 0.0
    %173 = vmatprep.subr.mxu0 0.0
    %174 = vmatpush1.msra.mxu0 0.0
    %175 = vmatprep.subr.mxu0 0.0
    %176 = vmatpush1.msra.mxu0 0.0
    %177 = vmatprep.subr.mxu0 0.0
    %178 = vmatpush1.msra.mxu0 0.0
    %179 = vmatprep.subr.mxu0 0.0
    %180 = vmatpush1.msra.mxu0 0.0
    %181 = vmatprep.subr.mxu0 0.0
    %182 = vmatpush1.msra.mxu0 0.0
    %183 = vmatprep.subr.mxu0 0.0
    %184 = vmatpush1.msra.mxu0 0.0
    %185 = vmatprep.subr.mxu0 0.0
    %186 = vmatpush1.msra.mxu0 0.0
    %187 = vmatprep.subr.mxu0 0.0
    %188 = vmatpush1.msra.mxu0 0.0
    %189 = vmatprep.subr.mxu0 0.0
    %190 = vmatpush1.msra.mxu0 0.0
    %191 = vmatprep.subr.mxu0 0.0
    %192 = vmatpush1.msra.mxu0 0.0
    %193 = vmatprep.subr.mxu0 0.0
    %194 = vmatpush1.msra.mxu0 0.0
    %195 = vmatprep.subr.mxu0 0.0
    %196 = vmatpush1.msra.mxu0 0.0
    %197 = vmatprep.subr.mxu0 0.0
    %198 = vmatpush1.msra.mxu0 0.0
    %199 = vmatprep.subr.mxu0 0.0
    %200 = vmatpush1.msra.mxu0 0.0
    %201 = vmatprep.subr.mxu0 0.0
    %202 = vmatpush1.msra.mxu0 0.0
    %203 = vmatprep.subr.mxu0 0.0
    %204 = vmatpush1.msra.mxu0 0.0
    %205 = vmatprep.subr.mxu0 0.0
    %206 = vmatpush1.msra.mxu0 0.0
    %207 = vmatprep.subr.mxu0 0.0
    %208 = vmatpush1.msra.mxu0 0.0
    %209 = vmatprep.subr.mxu0 0.0
    %210 = vmatpush1.msra.mxu0 0.0
    %211 = vmatprep.subr.mxu0 0.0
    %212 = vmatpush1.msra.mxu0 0.0
    %213 = vmatprep.subr.mxu0 0.0
    %214 = vmatpush1.msra.mxu0 0.0
    %215 = vmatprep.subr.mxu0 0.0
    %216 = vmatpush1.msra.mxu0 0.0
    %217 = vmatprep.subr.mxu0 0.0
    %218 = vmatpush1.msra.mxu0 0.0
    %219 = vmatprep.subr.mxu0 0.0
    %220 = vmatpush1.msra.mxu0 0.0
    %221 = vmatprep.subr.mxu0 0.0
    %222 = vmatpush1.msra.mxu0 0.0
    %223 = vmatprep.mubr.f32.mxu0 0.0
    %v224 = vand.u32 %v58, 4294901760
    %225 = vmatmul.mubr.f32.gmra.mrb[0].mxu0 %v224
    %v226 = vpop.f32.mrb[0].mxu0
    %v227 = vadd.f32 %v136, %v226
    %v228 = vpop.f32.mrb[0].mxu0
    %229 = vdwg.mxu0
    %230 = vmatprep.subr.mxu0 0.0
    %v231 = vand.u32 %v45, 4294901760
    %v232 = vsub.f32 %v45, %v231
    %233 = vmatpush1.msra.mxu0 %v232
    %234 = vmatprep.subr.mxu0 0.0
    %v235 = vand.u32 %v46, 4294901760
    %v236 = vsub.f32 %v46, %v235
    %237 = vmatpush1.msra.mxu0 %v236
    %238 = vmatprep.subr.mxu0 0.0
    %v239 = vand.u32 %v47, 4294901760
    %v240 = vsub.f32 %v47, %v239
    %241 = vmatpush1.msra.mxu0 %v240
    %242 = vmatprep.subr.mxu0 0.0
    %v243 = vand.u32 %v48, 4294901760
    %v244 = vsub.f32 %v48, %v243
    %245 = vmatpush1.msra.mxu0 %v244
    %246 = vmatprep.subr.mxu0 0.0
    %247 = vmatpush1.msra.mxu0 0.0
    %248 = vmatprep.subr.mxu0 0.0
    %249 = vmatpush1.msra.mxu0 0.0
    %250 = vmatprep.subr.mxu0 0.0
    %251 = vmatpush1.msra.mxu0 0.0
    %252 = vmatprep.subr.mxu0 0.0
    %253 = vmatpush1.msra.mxu0 0.0
    %254 = vmatprep.subr.mxu0 0.0
    %255 = vmatpush1.msra.mxu0 0.0
    %256 = vmatprep.subr.mxu0 0.0
    %257 = vmatpush1.msra.mxu0 0.0
    %258 = vmatprep.subr.mxu0 0.0
    %259 = vmatpush1.msra.mxu0 0.0
    %260 = vmatprep.subr.mxu0 0.0
    %261 = vmatpush1.msra.mxu0 0.0
    %262 = vmatprep.subr.mxu0 0.0
    %263 = vmatpush1.msra.mxu0 0.0
    %264 = vmatprep.subr.mxu0 0.0
    %265 = vmatpush1.msra.mxu0 0.0
    %266 = vmatprep.subr.mxu0 0.0
    %267 = vmatpush1.msra.mxu0 0.0
    %268 = vmatprep.subr.mxu0 0.0
    %269 = vmatpush1.msra.mxu0 0.0
    %270 = vmatprep.subr.mxu0 0.0
    %271 = vmatpush1.msra.mxu0 0.0
    %272 = vmatprep.subr.mxu0 0.0
    %273 = vmatpush1.msra.mxu0 0.0
    %274 = vmatprep.subr.mxu0 0.0
    %275 = vmatpush1.msra.mxu0 0.0
    %276 = vmatprep.subr.mxu0 0.0
    %277 = vmatpush1.msra.mxu0 0.0
    %278 = vmatprep.subr.mxu0 0.0
    %279 = vmatpush1.msra.mxu0 0.0
    %280 = vmatprep.subr.mxu0 0.0
    %281 = vmatpush1.msra.mxu0 0.0
    %282 = vmatprep.subr.mxu0 0.0
    %283 = vmatpush1.msra.mxu0 0.0
    %284 = vmatprep.subr.mxu0 0.0
    %285 = vmatpush1.msra.mxu0 0.0
    %286 = vmatprep.subr.mxu0 0.0
    %287 = vmatpush1.msra.mxu0 0.0
    %288 = vmatprep.subr.mxu0 0.0
    %289 = vmatpush1.msra.mxu0 0.0
    %290 = vmatprep.subr.mxu0 0.0
    %291 = vmatpush1.msra.mxu0 0.0
    %292 = vmatprep.subr.mxu0 0.0
    %293 = vmatpush1.msra.mxu0 0.0
    %294 = vmatprep.subr.mxu0 0.0
    %295 = vmatpush1.msra.mxu0 0.0
    %296 = vmatprep.subr.mxu0 0.0
    %297 = vmatpush1.msra.mxu0 0.0
    %298 = vmatprep.subr.mxu0 0.0
    %299 = vmatpush1.msra.mxu0 0.0
    %300 = vmatprep.subr.mxu0 0.0
    %301 = vmatpush1.msra.mxu0 0.0
    %302 = vmatprep.mubr.f32.mxu0 0.0
    %v303 = vand.u32 %v58, 4294901760
    %v304 = vsub.f32 %v58, %v303
    %305 = vmatmul.mubr.f32.gmra.mrb[0].mxu0 %v304
    %v306 = vpop.f32.mrb[0].mxu0
    %v307 = vadd.f32 %v227, %v306
    %v308 = vpop.f32.mrb[0].mxu0
    %309 = vdwg.mxu0
    %310 = vmatprep.subr.mxu0 0.0
    %v311 = vand.u32 %v45, 4294901760
    %312 = vmatpush1.msra.mxu0 %v311
    %313 = vmatprep.subr.mxu0 0.0
    %v314 = vand.u32 %v46, 4294901760
    %315 = vmatpush1.msra.mxu0 %v314
    %316 = vmatprep.subr.mxu0 0.0
    %v317 = vand.u32 %v47, 4294901760
    %318 = vmatpush1.msra.mxu0 %v317
    %319 = vmatprep.subr.mxu0 0.0
    %v320 = vand.u32 %v48, 4294901760
    %321 = vmatpush1.msra.mxu0 %v320
    %322 = vmatprep.subr.mxu0 0.0
    %323 = vmatpush1.msra.mxu0 0.0
    %324 = vmatprep.subr.mxu0 0.0
    %325 = vmatpush1.msra.mxu0 0.0
    %326 = vmatprep.subr.mxu0 0.0
    %327 = vmatpush1.msra.mxu0 0.0
    %328 = vmatprep.subr.mxu0 0.0
    %329 = vmatpush1.msra.mxu0 0.0
    %330 = vmatprep.subr.mxu0 0.0
    %331 = vmatpush1.msra.mxu0 0.0
    %332 = vmatprep.subr.mxu0 0.0
    %333 = vmatpush1.msra.mxu0 0.0
    %334 = vmatprep.subr.mxu0 0.0
    %335 = vmatpush1.msra.mxu0 0.0
    %336 = vmatprep.subr.mxu0 0.0
    %337 = vmatpush1.msra.mxu0 0.0
    %338 = vmatprep.subr.mxu0 0.0
    %339 = vmatpush1.msra.mxu0 0.0
    %340 = vmatprep.subr.mxu0 0.0
    %341 = vmatpush1.msra.mxu0 0.0
    %342 = vmatprep.subr.mxu0 0.0
    %343 = vmatpush1.msra.mxu0 0.0
    %344 = vmatprep.subr.mxu0 0.0
    %345 = vmatpush1.msra.mxu0 0.0
    %346 = vmatprep.subr.mxu0 0.0
    %347 = vmatpush1.msra.mxu0 0.0
    %348 = vmatprep.subr.mxu0 0.0
    %349 = vmatpush1.msra.mxu0 0.0
    %350 = vmatprep.subr.mxu0 0.0
    %351 = vmatpush1.msra.mxu0 0.0
    %352 = vmatprep.subr.mxu0 0.0
    %353 = vmatpush1.msra.mxu0 0.0
    %354 = vmatprep.subr.mxu0 0.0
    %355 = vmatpush1.msra.mxu0 0.0
    %356 = vmatprep.subr.mxu0 0.0
    %357 = vmatpush1.msra.mxu0 0.0
    %358 = vmatprep.subr.mxu0 0.0
    %359 = vmatpush1.msra.mxu0 0.0
    %360 = vmatprep.subr.mxu0 0.0
    %361 = vmatpush1.msra.mxu0 0.0
    %362 = vmatprep.subr.mxu0 0.0
    %363 = vmatpush1.msra.mxu0 0.0
    %364 = vmatprep.subr.mxu0 0.0
    %365 = vmatpush1.msra.mxu0 0.0
    %366 = vmatprep.subr.mxu0 0.0
    %367 = vmatpush1.msra.mxu0 0.0
    %368 = vmatprep.subr.mxu0 0.0
    %369 = vmatpush1.msra.mxu0 0.0
    %370 = vmatprep.subr.mxu0 0.0
    %371 = vmatpush1.msra.mxu0 0.0
    %372 = vmatprep.subr.mxu0 0.0
    %373 = vmatpush1.msra.mxu0 0.0
    %374 = vmatprep.subr.mxu0 0.0
    %375 = vmatpush1.msra.mxu0 0.0
    %376 = vmatprep.subr.mxu0 0.0
    %377 = vmatpush1.msra.mxu0 0.0
    %378 = vmatprep.mubr.f32.mxu0 0.0
    %v379 = vand.u32 %v58, 4294901760
    %v380 = vsub.f32 %v58, %v379
    %v381 = vand.u32 %v380, 4294901760
    %382 = vmatmul.mubr.f32.gmra.mrb[0].mxu0 %v381
    %v383 = vpop.f32.mrb[0].mxu0
    %v384 = vadd.f32 %v307, %v383
    %v385 = vpop.f32.mrb[0].mxu0
    %386 = vdwg.mxu0
    %387 = vmatprep.subr.mxu0 0.0
    %v388 = vand.u32 %v45, 4294901760
    %v389 = vsub.f32 %v45, %v388
    %v390 = vand.u32 %v389, 4294901760
    %391 = vmatpush1.msra.mxu0 %v390
    %392 = vmatprep.subr.mxu0 0.0
    %v393 = vand.u32 %v46, 4294901760
    %v394 = vsub.f32 %v46, %v393
    %v395 = vand.u32 %v394, 4294901760
    %396 = vmatpush1.msra.mxu0 %v395
    %397 = vmatprep.subr.mxu0 0.0
    %v398 = vand.u32 %v47, 4294901760
    %v399 = vsub.f32 %v47, %v398
    %v400 = vand.u32 %v399, 4294901760
    %401 = vmatpush1.msra.mxu0 %v400
    %402 = vmatprep.subr.mxu0 0.0
    %v403 = vand.u32 %v48, 4294901760
    %v404 = vsub.f32 %v48, %v403
    %v405 = vand.u32 %v404, 4294901760
    %406 = vmatpush1.msra.mxu0 %v405
    %407 = vmatprep.subr.mxu0 0.0
    %408 = vmatpush1.msra.mxu0 0.0
    %409 = vmatprep.subr.mxu0 0.0
    %410 = vmatpush1.msra.mxu0 0.0
    %411 = vmatprep.subr.mxu0 0.0
    %412 = vmatpush1.msra.mxu0 0.0
    %413 = vmatprep.subr.mxu0 0.0
    %414 = vmatpush1.msra.mxu0 0.0
    %415 = vmatprep.subr.mxu0 0.0
    %416 = vmatpush1.msra.mxu0 0.0
    %417 = vmatprep.subr.mxu0 0.0
    %418 = vmatpush1.msra.mxu0 0.0
    %419 = vmatprep.subr.mxu0 0.0
    %420 = vmatpush1.msra.mxu0 0.0
    %421 = vmatprep.subr.mxu0 0.0
    %422 = vmatpush1.msra.mxu0 0.0
    %423 = vmatprep.subr.mxu0 0.0
    %424 = vmatpush1.msra.mxu0 0.0
    %425 = vmatprep.subr.mxu0 0.0
    %426 = vmatpush1.msra.mxu0 0.0
    %427 = vmatprep.subr.mxu0 0.0
    %428 = vmatpush1.msra.mxu0 0.0
    %429 = vmatprep.subr.mxu0 0.0
    %430 = vmatpush1.msra.mxu0 0.0
    %431 = vmatprep.subr.mxu0 0.0
    %432 = vmatpush1.msra.mxu0 0.0
    %433 = vmatprep.subr.mxu0 0.0
    %434 = vmatpush1.msra.mxu0 0.0
    %435 = vmatprep.subr.mxu0 0.0
    %436 = vmatpush1.msra.mxu0 0.0
    %437 = vmatprep.subr.mxu0 0.0
    %438 = vmatpush1.msra.mxu0 0.0
    %439 = vmatprep.subr.mxu0 0.0
    %440 = vmatpush1.msra.mxu0 0.0
    %441 = vmatprep.subr.mxu0 0.0
    %442 = vmatpush1.msra.mxu0 0.0
    %443 = vmatprep.subr.mxu0 0.0
    %444 = vmatpush1.msra.mxu0 0.0
    %445 = vmatprep.subr.mxu0 0.0
    %446 = vmatpush1.msra.mxu0 0.0
    %447 = vmatprep.subr.mxu0 0.0
    %448 = vmatpush1.msra.mxu0 0.0
    %449 = vmatprep.subr.mxu0 0.0
    %450 = vmatpush1.msra.mxu0 0.0
    %451 = vmatprep.subr.mxu0 0.0
    %452 = vmatpush1.msra.mxu0 0.0
    %453 = vmatprep.subr.mxu0 0.0
    %454 = vmatpush1.msra.mxu0 0.0
    %455 = vmatprep.subr.mxu0 0.0
    %456 = vmatpush1.msra.mxu0 0.0
    %457 = vmatprep.subr.mxu0 0.0
    %458 = vmatpush1.msra.mxu0 0.0
    %459 = vmatprep.subr.mxu0 0.0
    %460 = vmatpush1.msra.mxu0 0.0
    %461 = vmatprep.subr.mxu0 0.0
    %462 = vmatpush1.msra.mxu0 0.0
    %463 = vmatprep.mubr.f32.mxu0 0.0
    %v464 = vand.u32 %v58, 4294901760
    %465 = vmatmul.mubr.f32.gmra.mrb[0].mxu0 %v464
    %v466 = vpop.f32.mrb[0].mxu0
    %v467 = vadd.f32 %v384, %v466
    %v468 = vpop.f32.mrb[0].mxu0
    %469 = vdwg.mxu0
    %470 = vmatprep.subr.mxu0 0.0
    %v471 = vand.u32 %v45, 4294901760
    %472 = vmatpush1.msra.mxu0 %v471
    %473 = vmatprep.subr.mxu0 0.0
    %v474 = vand.u32 %v46, 4294901760
    %475 = vmatpush1.msra.mxu0 %v474
    %476 = vmatprep.subr.mxu0 0.0
    %v477 = vand.u32 %v47, 4294901760
    %478 = vmatpush1.msra.mxu0 %v477
    %479 = vmatprep.subr.mxu0 0.0
    %v480 = vand.u32 %v48, 4294901760
    %481 = vmatpush1.msra.mxu0 %v480
    %482 = vmatprep.subr.mxu0 0.0
    %483 = vmatpush1.msra.mxu0 0.0
    %484 = vmatprep.subr.mxu0 0.0
    %485 = vmatpush1.msra.mxu0 0.0
    %486 = vmatprep.subr.mxu0 0.0
    %487 = vmatpush1.msra.mxu0 0.0
    %488 = vmatprep.subr.mxu0 0.0
    %489 = vmatpush1.msra.mxu0 0.0
    %490 = vmatprep.subr.mxu0 0.0
    %491 = vmatpush1.msra.mxu0 0.0
    %492 = vmatprep.subr.mxu0 0.0
    %493 = vmatpush1.msra.mxu0 0.0
    %494 = vmatprep.subr.mxu0 0.0
    %495 = vmatpush1.msra.mxu0 0.0
    %496 = vmatprep.subr.mxu0 0.0
    %497 = vmatpush1.msra.mxu0 0.0
    %498 = vmatprep.subr.mxu0 0.0
    %499 = vmatpush1.msra.mxu0 0.0
    %500 = vmatprep.subr.mxu0 0.0
    %501 = vmatpush1.msra.mxu0 0.0
    %502 = vmatprep.subr.mxu0 0.0
    %503 = vmatpush1.msra.mxu0 0.0
    %504 = vmatprep.subr.mxu0 0.0
    %505 = vmatpush1.msra.mxu0 0.0
    %506 = vmatprep.subr.mxu0 0.0
    %507 = vmatpush1.msra.mxu0 0.0
    %508 = vmatprep.subr.mxu0 0.0
    %509 = vmatpush1.msra.mxu0 0.0
    %510 = vmatprep.subr.mxu0 0.0
    %511 = vmatpush1.msra.mxu0 0.0
    %512 = vmatprep.subr.mxu0 0.0
    %513 = vmatpush1.msra.mxu0 0.0
    %514 = vmatprep.subr.mxu0 0.0
    %515 = vmatpush1.msra.mxu0 0.0
    %516 = vmatprep.subr.mxu0 0.0
    %517 = vmatpush1.msra.mxu0 0.0
    %518 = vmatprep.subr.mxu0 0.0
    %519 = vmatpush1.msra.mxu0 0.0
    %520 = vmatprep.subr.mxu0 0.0
    %521 = vmatpush1.msra.mxu0 0.0
    %522 = vmatprep.subr.mxu0 0.0
    %523 = vmatpush1.msra.mxu0 0.0
    %524 = vmatprep.subr.mxu0 0.0
    %525 = vmatpush1.msra.mxu0 0.0
    %526 = vmatprep.subr.mxu0 0.0
    %527 = vmatpush1.msra.mxu0 0.0
    %528 = vmatprep.subr.mxu0 0.0
    %529 = vmatpush1.msra.mxu0 0.0
    %530 = vmatprep.subr.mxu0 0.0
    %531 = vmatpush1.msra.mxu0 0.0
    %532 = vmatprep.subr.mxu0 0.0
    %533 = vmatpush1.msra.mxu0 0.0
    %534 = vmatprep.subr.mxu0 0.0
    %535 = vmatpush1.msra.mxu0 0.0
    %536 = vmatprep.subr.mxu0 0.0
    %537 = vmatpush1.msra.mxu0 0.0
    %538 = vmatprep.mubr.f32.mxu0 0.0
    %v539 = vand.u32 %v58, 4294901760
    %540 = vmatmul.mubr.f32.gmra.mrb[0].mxu0 %v539
    %v541 = vpop.f32.mrb[0].mxu0
    %v542 = vadd.f32 %v467, %v541
    %v543 = vpop.f32.mrb[0].mxu0
    %544 = vdwg.mxu0
    %545 = vmax.xlane.f32.xlu0 %v542
    %v546 = vpop.xlane.xlu0 %545
    %v547 = vsub.f32 %v542, %v546
    %v548 = vmul.f32 %v547, 1.442695
    %v549 = vpow.pop %v548
    %550 = vadd.xlane.f32.xlu0 %v549
    %v551 = vpop.xlane.xlu0 %550
    %v552 = vrcp.pop %v551
    %v553 = vmul.f32 %v551, %v552
    %v554 = vsub.f32 2.0, %v553
    %v555 = vmul.f32 %v552, %v554
    %v556 = vmul.f32 %v549, %v555
    %v557 = vld [vmem:[%s3] sm:$0xff]
    %v558 = vmul.f32 %v557, %v556
    %559 = vst [vmem:[#allocation7] sm:$0xff] %v558
    // Predicated region
    $region26: #{tpu_custom_call.1} parent=1 // pred_check
      _
    $region27: #{tpu_custom_call.1} parent=1 // pred_check_branch
      %561 = sbr.rel (0) target = $region29
    $region28: #{tpu_custom_call.1} parent=1 // pred_region
      %s563 = ssub.s32 128, 128
      %564 = vsyncadd [#allocation4], %s563
      %s566 = sshll.u32 [#allocation7], 4
      %s567 = int_to_ptr.vmem [resolvable:$true] %s566
      %569 = dma.vmem_to_hbm [thread:$0]  %s567, 128, %s4, [#allocation4]
    $region29: #{tpu_custom_call.1} parent=1 // pred_fallthru
      _
    // Predicated region
    $region30: #{tpu_custom_call.1} parent=1 // pred_check
      _
    $region31: #{tpu_custom_call.1} parent=1 // pred_check_branch
      %571 = sbr.rel (0) target = $region33
    $region32: #{tpu_custom_call.1} parent=1 // pred_region
      %572 = dma.done [#allocation4], 128
    $region33: #{tpu_custom_call.1} parent=1 // pred_fallthru
      _
    %573 = vsyncpa [#allocation3], 1
    %574 = vsyncpa [#allocation6], 1
    %575 = vsyncpa [#allocation4], 1

</llo_original>
